<compile_context>
chip_gen: v7x
topology: tpu7x:2x2x1
jax: 0.10.0
libtpu: 0.0.40
codegen_flags: <defaults>
</compile_context>

<pallas_src>
import functools

import jax
import jax.numpy as jnp
from jax.experimental import pallas as pl
from jax.experimental.pallas import tpu as pltpu

LN_EPS = 1e-5
NEG_SLOPE = 0.1


# ----------------------------- in-kernel math -----------------------------

def _ln_normalize(x):
    """One-pass LayerNorm statistics; gamma/beta are folded into the weights."""
    mu = jnp.mean(x, axis=-1, keepdims=True)
    msq = jnp.mean(x * x, axis=-1, keepdims=True)
    var = msq - mu * mu
    return (x - mu) * jax.lax.rsqrt(var + LN_EPS)


def _leaky_relu(x):
    return jnp.maximum(x, NEG_SLOPE * x)


# ----------------------------- fused kernel (weights resident) -----------------------------

def _fused_kernel(x_ref, w1_ref, w2_ref, vec_ref, o_ref):
    # x_ref: (TB, D) activation dtype (bf16); weights: (D, D) bf16; vec: (2, D) f32 biases.
    x = x_ref[...].astype(jnp.float32)
    b1 = vec_ref[0:1, :]
    b2 = vec_ref[1:2, :]

    # fc1(norm1(x))  -- gamma/beta already folded into w1 / b1
    h1 = _ln_normalize(x).astype(w1_ref.dtype)
    out = jnp.dot(h1, w1_ref[...], preferred_element_type=jnp.float32) + b1

    # activation; dropout (eval mode) == identity
    out = _leaky_relu(out)

    # fc2(norm2(out))
    h2 = _ln_normalize(out).astype(w2_ref.dtype)
    out = jnp.dot(h2, w2_ref[...], preferred_element_type=jnp.float32) + b2

    # activation(out + residual)   (residual add in f32)
    o_ref[...] = _leaky_relu(out + x).astype(o_ref.dtype)


# ----------------------------- split kernels (large D: weights feature-tiled) -----------------------------

def _fc1_kernel(x_ref, w1_ref, b1_ref, h_ref):
    # x_ref: (TB, D); w1_ref: (D, TD) column tile; b1_ref: (1, TD); h_ref: (TB, TD)
    x = x_ref[...].astype(jnp.float32)
    h1 = _ln_normalize(x).astype(w1_ref.dtype)          # recomputed per N-tile (cheap, overlaps DMA)
    out = jnp.dot(h1, w1_ref[...], preferred_element_type=jnp.float32) + b1_ref[...]
    h_ref[...] = _leaky_relu(out).astype(h_ref.dtype)   # dropout (eval) == identity


def _fc2_kernel(h_ref, w2_ref, b2_ref, x_ref, o_ref, h2n_ref, acc_ref):
    # h_ref: (TB, D) fc1 output; w2_ref: (TD, D) K-tile; b2_ref: (1, D); x_ref: (TB, D)
    # h2n_ref: (TB, D) bf16 scratch (normalized fc1 output); acc_ref: (TB, D) f32 accumulator
    k = pl.program_id(1)
    td = w2_ref.shape[0]

    @pl.when(k == 0)
    def _():
        h = h_ref[...].astype(jnp.float32)
        h2n_ref[...] = _ln_normalize(h).astype(h2n_ref.dtype)
        acc_ref[...] = jnp.zeros_like(acc_ref)

    start = pl.multiple_of(k * td, 128)
    chunk = h2n_ref[:, pl.ds(start, td)]
    acc_ref[...] += jnp.dot(chunk, w2_ref[...], preferred_element_type=jnp.float32)

    @pl.when(k == pl.num_programs(1) - 1)
    def _():
        out = acc_ref[...] + b2_ref[...]
        o_ref[...] = _leaky_relu(out + x_ref[...].astype(jnp.float32)).astype(o_ref.dtype)


# ----------------------------- host-side helpers -----------------------------

def _round_up(a, b):
    return (a + b - 1) // b * b


def _vmem_budget_bytes():
    """~75% of this generation's physical VMEM per TensorCore (48 MiB fallback)."""
    try:
        info = pltpu.get_tpu_info()
        cap = getattr(info, "vmem_capacity_bytes", None)
        if cap:
            return int(cap) * 3 // 4
    except Exception:
        pass
    return 48 * 1024 * 1024  # safe on every generation (v7x has 64 MiB / TC)


def _choose_tile_b(B, requested):
    tb = min(requested, _round_up(max(B, 8), 8))
    if B >= 16:
        # keep >= 2 row tiles so the "parallel" batch axis can shard across both v7x TCs
        tb = min(tb, _round_up((B + 1) // 2, 8))
    return max(8, _round_up(tb, 8))


def _fused_vmem_bytes(tb, D, wbytes, abytes):
    return (2 * D * D * wbytes        # two resident weight matrices (single-buffered)
            + 2 * D * 4               # bias slab
            + 2 * 2 * tb * D * abytes # double-buffered x-in and out tiles
            + 6 * tb * D * 4)         # live f32 temporaries


# ----------------------------- public entry point -----------------------------

@functools.partial(
    jax.jit,
    static_argnames=("tile_b", "weight_dtype", "activation_dtype", "feature_tile", "force_split"),
)
def residual_block(x, params, *, tile_b=512, weight_dtype=jnp.bfloat16,
                   activation_dtype=jnp.bfloat16, feature_tile=512, force_split=False):
    orig_shape = x.shape
    D = orig_shape[-1]
    x2 = x.reshape(-1, D)
    B = x2.shape[0]

    w1, b1, w2, b2, g1, be1, g2, be2 = params

    # Fold LN gamma into the (f32) weights and beta into the bias, then quantize weights.
    #   (norm(x)*g + be) @ W + b  ==  norm(x) @ (g[:,None]*W) + (be @ W + b)
    w1_q = (g1[:, None] * w1).astype(weight_dtype)
    w2_q = (g2[:, None] * w2).astype(weight_dtype)
    b1_eff = (b1 + be1 @ w1).astype(jnp.float32)
    b2_eff = (b2 + be2 @ w2).astype(jnp.float32)

    wbytes = jnp.dtype(weight_dtype).itemsize
    abytes = jnp.dtype(activation_dtype).itemsize
    budget = _vmem_budget_bytes()

    # Batch tiling (+ zero-padding so any B works, no assert).
    tb = _choose_tile_b(B, tile_b)
    while _fused_vmem_bytes(tb, D, wbytes, abytes) > budget and tb > 128:
        tb = max(128, _round_up(tb // 2, 8))
    Bp = _round_up(B, tb)

    # bf16 activation traffic in; pad rows with zeros (sliced off afterwards).
    xk = x2.astype(activation_dtype)
    if Bp != B:
        xk = jnp.pad(xk, ((0, Bp - B), (0, 0)))

    use_split = force_split or _fused_vmem_bytes(tb, D, wbytes, abytes) > budget
    if D % 128 != 0:
        use_split = False  # feature tiling needs lane-aligned tiles; fall back to fused

    if not use_split:
        # ---------------- fused path: both DxD weights resident in VMEM ----------------
        vec = jnp.stack([b1_eff, b2_eff], axis=0)  # (2, D) f32 bias slab -> 1 DMA
        cost = pl.CostEstimate(
            flops=4 * Bp * D * D,
            transcendentals=2 * Bp,
            bytes_accessed=2 * Bp * D * abytes + 2 * D * D * wbytes + 2 * D * 4,
        )
        out = pl.pallas_call(
            _fused_kernel,
            out_shape=jax.ShapeDtypeStruct((Bp, D), activation_dtype),
            grid_spec=pltpu.PrefetchScalarGridSpec(
                num_scalar_prefetch=0,
                grid=(Bp // tb,),
                in_specs=[
                    pl.BlockSpec((tb, D), lambda i: (i, 0)),                                 # x
                    pl.BlockSpec((D, D), lambda i: (0, 0), pipeline_mode=pl.Buffered(1)),    # w1'
                    pl.BlockSpec((D, D), lambda i: (0, 0), pipeline_mode=pl.Buffered(1)),    # w2'
                    pl.BlockSpec((2, D), lambda i: (0, 0), pipeline_mode=pl.Buffered(1)),    # biases
                ],
                out_specs=pl.BlockSpec((tb, D), lambda i: (i, 0)),
            ),
            compiler_params=pltpu.CompilerParams(
                dimension_semantics=("parallel",),
                vmem_limit_bytes=budget,
            ),
            cost_estimate=cost,
        )(xk, w1_q, w2_q, vec)
    else:
        # ---------------- large-D path: two feature-tiled pallas_calls ----------------
        td = min(feature_tile, D)
        td = max(128, (td // 128) * 128)
        while D % td:
            td -= 128
        grid2 = (Bp // tb, D // td)
        b1_row = b1_eff.reshape(1, D)
        b2_row = b2_eff.reshape(1, D)

        # fc1: output-N tiled.  h = LeakyReLU(norm1(x) @ w1' + b1')
        h = pl.pallas_call(
            _fc1_kernel,
            out_shape=jax.ShapeDtypeStruct((Bp, D), activation_dtype),
            grid_spec=pltpu.PrefetchScalarGridSpec(
                num_scalar_prefetch=0,
                grid=grid2,
                in_specs=[
                    pl.BlockSpec((tb, D), lambda i, j: (i, 0)),   # x row block (resident across j)
                    pl.BlockSpec((D, td), lambda i, j: (0, j)),   # w1 column tile
                    pl.BlockSpec((1, td), lambda i, j: (0, j)),   # bias chunk
                ],
                out_specs=pl.BlockSpec((tb, td), lambda i, j: (i, j)),
            ),
            compiler_params=pltpu.CompilerParams(
                dimension_semantics=("parallel", "arbitrary"),
                vmem_limit_bytes=budget,
            ),
            cost_estimate=pl.CostEstimate(
                flops=2 * Bp * D * D,
                transcendentals=Bp * (D // td),
                bytes_accessed=2 * Bp * D * abytes + D * D * wbytes + D * 4,
            ),
        )(xk, w1_q, b1_row)

        # fc2: K tiled with f32 accumulator.  out = LeakyReLU(norm2(h) @ w2' + b2' + x)
        out = pl.pallas_call(
            _fc2_kernel,
            out_shape=jax.ShapeDtypeStruct((Bp, D), activation_dtype),
            grid_spec=pltpu.PrefetchScalarGridSpec(
                num_scalar_prefetch=0,
                grid=grid2,
                in_specs=[
                    pl.BlockSpec((tb, D), lambda i, k: (i, 0)),                               # h
                    pl.BlockSpec((td, D), lambda i, k: (k, 0)),                               # w2 K-tile
                    pl.BlockSpec((1, D), lambda i, k: (0, 0), pipeline_mode=pl.Buffered(1)),  # b2
                    pl.BlockSpec((tb, D), lambda i, k: (i, 0)),                               # residual x
                ],
                out_specs=pl.BlockSpec((tb, D), lambda i, k: (i, 0)),
                scratch_shapes=[
                    pltpu.VMEM((tb, D), weight_dtype),   # normalized fc1 output (MXU operand)
                    pltpu.VMEM((tb, D), jnp.float32),    # f32 accumulator
                ],
            ),
            compiler_params=pltpu.CompilerParams(
                dimension_semantics=("parallel", "arbitrary"),
                vmem_limit_bytes=budget,
            ),
            cost_estimate=pl.CostEstimate(
                flops=2 * Bp * D * D,
                transcendentals=Bp,
                bytes_accessed=3 * Bp * D * abytes + D * D * wbytes + D * 4,
            ),
        )(h, w2_q, b2_row, xk)

    out = out[:B]
    return out.reshape(orig_shape)


# ----------------------------- reference & params -----------------------------

def init_params(key, dim):
    """nn.Linear / nn.LayerNorm shaped params (LN params perturbed to exercise the fold)."""
    k1, k2, k3, k4, k5, k6, k7, k8 = jax.random.split(key, 8)
    bound = dim ** -0.5
    # nn.Linear weight is (out, in); store transposed (in, out) for x @ W.T.
    w1_t = jax.random.uniform(k1, (dim, dim), jnp.float32, -bound, bound)
    b1 = jax.random.uniform(k2, (dim,), jnp.float32, -bound, bound)
    w2_t = jax.random.uniform(k3, (dim, dim), jnp.float32, -bound, bound)
    b2 = jax.random.uniform(k4, (dim,), jnp.float32, -bound, bound)
    g1 = 1.0 + 0.1 * jax.random.normal(k5, (dim,), jnp.float32)
    be1 = 0.05 * jax.random.normal(k6, (dim,), jnp.float32)
    g2 = 1.0 + 0.1 * jax.random.normal(k7, (dim,), jnp.float32)
    be2 = 0.05 * jax.random.normal(k8, (dim,), jnp.float32)
    return (w1_t, b1, w2_t, b2, g1, be1, g2, be2)


def residual_block_ref(x, params, weight_dtype=jnp.bfloat16, activation_dtype=jnp.bfloat16):
    """Pure-JAX reference of the PyTorch forward (eval mode) under the kernel's
    precision policy (bf16 weights/activations, f32 accumulation, folded LN params).
    A true f32 PyTorch run differs from this at the ~1e-3..1e-2 relative level."""
    w1, b1, w2, b2, g1, be1, g2, be2 = params
    w1e = (g1[:, None] * w1).astype(weight_dtype).astype(jnp.float32)
    w2e = (g2[:, None] * w2).astype(weight_dtype).astype(jnp.float32)
    b1e = b1 + be1 @ w1
    b2e = b2 + be2 @ w2
    xk = x.astype(activation_dtype).astype(jnp.float32)
    h1 = _ln_normalize(xk).astype(weight_dtype).astype(jnp.float32)
    out = h1 @ w1e + b1e
    out = _leaky_relu(out)                      # dropout (eval) == identity
    h2 = _ln_normalize(out).astype(weight_dtype).astype(jnp.float32)
    out = h2 @ w2e + b2e
    out = _leaky_relu(out + xk)
    return out.astype(activation_dtype)


if __name__ == "__main__":
    key = jax.random.PRNGKey(0)
    kx1, kp1, kx2, kp2 = jax.random.split(key, 4)

    # ---- small demo: fused resident-weight path ----
    B, D = 256, 128
    x = jax.random.normal(kx1, (B, D), jnp.float32)
    params = init_params(kp1, D)
    y = residual_block(x, params)
    jax.block_until_ready(y)
    y_ref = residual_block_ref(x, params)
    assert y.shape == (B, D)
    assert jnp.allclose(y.astype(jnp.float32), y_ref.astype(jnp.float32),
                        atol=5e-2, rtol=5e-2), "fused path mismatch vs reference"

    # ---- exercise the large-D (feature-tiled, two-call) path at small shapes ----
    B2, D2 = 64, 256
    x2 = jax.random.normal(kx2, (B2, D2), jnp.float32)
    params2 = init_params(kp2, D2)
    y2 = residual_block(x2, params2, feature_tile=128, force_split=True)
    jax.block_until_ready(y2)
    y2_ref = residual_block_ref(x2, params2)
    assert y2.shape == (B2, D2)
    assert jnp.allclose(y2.astype(jnp.float32), y2_ref.astype(jnp.float32),
                        atol=1e-1, rtol=1e-1), "split path mismatch vs reference"

    print("KERNEL_OK")
</pallas_src>

<mosaic_0001>
module attributes {stable_mosaic.version = 11 : i64} {
  func.func @_fused_kernel(%arg0: i32, %arg1: memref<128x128xbf16, #tpu.memory_space<vmem>>, %arg2: memref<128x128xbf16, #tpu.memory_space<vmem>>, %arg3: memref<128x128xbf16, #tpu.memory_space<vmem>>, %arg4: memref<2x128xf32, #tpu.memory_space<vmem>>, %arg5: memref<128x128xbf16, #tpu.memory_space<vmem>>) attributes {dimension_semantics = [#tpu.dimension_semantics<parallel>], iteration_bounds = array<i64: 2>, scalar_prefetch = 0 : i64, scratch_operands = 0 : i64, tpu.core_type = #tpu.core_type<tc>, window_params = [{transform_indices = @transform_0, window_bounds = array<i64: 128, 128>}, {pipeline_mode = #tpu.pipeline_mode<synchronous>, transform_indices = @transform_1, window_bounds = array<i64: 128, 128>}, {pipeline_mode = #tpu.pipeline_mode<synchronous>, transform_indices = @transform_2, window_bounds = array<i64: 128, 128>}, {pipeline_mode = #tpu.pipeline_mode<synchronous>, transform_indices = @transform_3, window_bounds = array<i64: 2, 128>}, {transform_indices = @transform_4, window_bounds = array<i64: 128, 128>}]} {
    %c0 = arith.constant 0 : index
    %c0_0 = arith.constant 0 : index
    %0 = vector.load %arg1[%c0, %c0_0] : memref<128x128xbf16, #tpu.memory_space<vmem>>, vector<128x128xbf16>
    %1 = arith.extf %0 : vector<128x128xbf16> to vector<128x128xf32>
    %c0_1 = arith.constant 0 : index
    %c0_2 = arith.constant 0 : index
    %2 = vector.load %arg4[%c0_1, %c0_2] : memref<2x128xf32, #tpu.memory_space<vmem>>, vector<1x128xf32>
    %c1 = arith.constant 1 : index
    %c0_3 = arith.constant 0 : index
    %3 = vector.load %arg4[%c1, %c0_3] : memref<2x128xf32, #tpu.memory_space<vmem>>, vector<1x128xf32>
    %cst = arith.constant dense<0.000000e+00> : vector<128xf32>
    %4 = vector.multi_reduction <add>, %1, %cst [1] : vector<128x128xf32> to vector<128xf32>
    %5 = vector.shape_cast %4 : vector<128xf32> to vector<128x1xf32>
    %cst_4 = arith.constant 1.280000e+02 : f32
    %6 = vector.broadcast %cst_4 : f32 to vector<128x1xf32>
    %7 = arith.divf %5, %6 : vector<128x1xf32>
    %8 = arith.mulf %1, %1 : vector<128x128xf32>
    %cst_5 = arith.constant dense<0.000000e+00> : vector<128xf32>
    %9 = vector.multi_reduction <add>, %8, %cst_5 [1] : vector<128x128xf32> to vector<128xf32>
    %10 = vector.shape_cast %9 : vector<128xf32> to vector<128x1xf32>
    %cst_6 = arith.constant 1.280000e+02 : f32
    %11 = vector.broadcast %cst_6 : f32 to vector<128x1xf32>
    %12 = arith.divf %10, %11 : vector<128x1xf32>
    %13 = arith.mulf %7, %7 : vector<128x1xf32>
    %14 = arith.subf %12, %13 : vector<128x1xf32>
    %15 = vector.broadcast %7 : vector<128x1xf32> to vector<128x128xf32>
    %16 = arith.subf %1, %15 : vector<128x128xf32>
    %cst_7 = arith.constant 9.99999974E-6 : f32
    %17 = vector.broadcast %cst_7 : f32 to vector<128x1xf32>
    %18 = arith.addf %14, %17 : vector<128x1xf32>
    %19 = math.rsqrt %18 : vector<128x1xf32>
    %20 = vector.broadcast %19 : vector<128x1xf32> to vector<128x128xf32>
    %21 = arith.mulf %16, %20 : vector<128x128xf32>
    %22 = arith.truncf %21 : vector<128x128xf32> to vector<128x128xbf16>
    %c0_8 = arith.constant 0 : index
    %c0_9 = arith.constant 0 : index
    %23 = vector.load %arg2[%c0_8, %c0_9] : memref<128x128xbf16, #tpu.memory_space<vmem>>, vector<128x128xbf16>
    %cst_10 = arith.constant dense<0.000000e+00> : vector<128x128xf32>
    %24 = tpu.matmul %22, %23, %cst_10 {dimension_numbers = #tpu.dot_dimension_numbers<[1], [0], [0], [1], [0, 0, 1, 1], [], []>} : vector<128x128xbf16>, vector<128x128xbf16>, vector<128x128xf32> -> vector<128x128xf32>
    %25 = vector.broadcast %2 : vector<1x128xf32> to vector<128x128xf32>
    %26 = arith.addf %24, %25 : vector<128x128xf32>
    %cst_11 = arith.constant 1.000000e-01 : f32
    %27 = vector.broadcast %cst_11 : f32 to vector<128x128xf32>
    %28 = arith.mulf %27, %26 : vector<128x128xf32>
    %29 = arith.maximumf %26, %28 : vector<128x128xf32>
    %cst_12 = arith.constant dense<0.000000e+00> : vector<128xf32>
    %30 = vector.multi_reduction <add>, %29, %cst_12 [1] : vector<128x128xf32> to vector<128xf32>
    %31 = vector.shape_cast %30 : vector<128xf32> to vector<128x1xf32>
    %cst_13 = arith.constant 1.280000e+02 : f32
    %32 = vector.broadcast %cst_13 : f32 to vector<128x1xf32>
    %33 = arith.divf %31, %32 : vector<128x1xf32>
    %34 = arith.mulf %29, %29 : vector<128x128xf32>
    %cst_14 = arith.constant dense<0.000000e+00> : vector<128xf32>
    %35 = vector.multi_reduction <add>, %34, %cst_14 [1] : vector<128x128xf32> to vector<128xf32>
    %36 = vector.shape_cast %35 : vector<128xf32> to vector<128x1xf32>
    %cst_15 = arith.constant 1.280000e+02 : f32
    %37 = vector.broadcast %cst_15 : f32 to vector<128x1xf32>
    %38 = arith.divf %36, %37 : vector<128x1xf32>
    %39 = arith.mulf %33, %33 : vector<128x1xf32>
    %40 = arith.subf %38, %39 : vector<128x1xf32>
    %41 = vector.broadcast %33 : vector<128x1xf32> to vector<128x128xf32>
    %42 = arith.subf %29, %41 : vector<128x128xf32>
    %cst_16 = arith.constant 9.99999974E-6 : f32
    %43 = vector.broadcast %cst_16 : f32 to vector<128x1xf32>
    %44 = arith.addf %40, %43 : vector<128x1xf32>
    %45 = math.rsqrt %44 : vector<128x1xf32>
    %46 = vector.broadcast %45 : vector<128x1xf32> to vector<128x128xf32>
    %47 = arith.mulf %42, %46 : vector<128x128xf32>
    %48 = arith.truncf %47 : vector<128x128xf32> to vector<128x128xbf16>
    %c0_17 = arith.constant 0 : index
    %c0_18 = arith.constant 0 : index
    %49 = vector.load %arg3[%c0_17, %c0_18] : memref<128x128xbf16, #tpu.memory_space<vmem>>, vector<128x128xbf16>
    %cst_19 = arith.constant dense<0.000000e+00> : vector<128x128xf32>
    %50 = tpu.matmul %48, %49, %cst_19 {dimension_numbers = #tpu.dot_dimension_numbers<[1], [0], [0], [1], [0, 0, 1, 1], [], []>} : vector<128x128xbf16>, vector<128x128xbf16>, vector<128x128xf32> -> vector<128x128xf32>
    %51 = vector.broadcast %3 : vector<1x128xf32> to vector<128x128xf32>
    %52 = arith.addf %50, %51 : vector<128x128xf32>
    %53 = arith.addf %52, %1 : vector<128x128xf32>
    %cst_20 = arith.constant 1.000000e-01 : f32
    %54 = vector.broadcast %cst_20 : f32 to vector<128x128xf32>
    %55 = arith.mulf %54, %53 : vector<128x128xf32>
    %56 = arith.maximumf %53, %55 : vector<128x128xf32>
    %57 = arith.truncf %56 : vector<128x128xf32> to vector<128x128xbf16>
    %c0_21 = arith.constant 0 : index
    %c0_22 = arith.constant 0 : index
    %58 = vector.load %arg5[%c0_21, %c0_22] : memref<128x128xbf16, #tpu.memory_space<vmem>>, vector<128x128xbf16>
    tpu.vector_store %arg5[%c0_21, %c0_22], %57 {strides = array<i32>} : memref<128x128xbf16, #tpu.memory_space<vmem>>, vector<128x128xbf16>,
    return
  }
  func.func @transform_0(%arg0: i32) -> (i32, i32) {
    %c0_i32 = arith.constant 0 : i32
    %c0_i32_0 = arith.constant 0 : i32
    return %arg0, %c0_i32 : i32, i32
  }
  func.func @transform_1(%arg0: i32) -> (i32, i32) {
    %c0_i32 = arith.constant 0 : i32
    %c0_i32_0 = arith.constant 0 : i32
    %c0_i32_1 = arith.constant 0 : i32
    return %c0_i32, %c0_i32_0 : i32, i32
  }
  func.func @transform_2(%arg0: i32) -> (i32, i32) {
    %c0_i32 = arith.constant 0 : i32
    %c0_i32_0 = arith.constant 0 : i32
    %c0_i32_1 = arith.constant 0 : i32
    return %c0_i32, %c0_i32_0 : i32, i32
  }
  func.func @transform_3(%arg0: i32) -> (i32, i32) {
    %c0_i32 = arith.constant 0 : i32
    %c0_i32_0 = arith.constant 0 : i32
    %c0_i32_1 = arith.constant 0 : i32
    return %c0_i32, %c0_i32_0 : i32, i32
  }
  func.func @transform_4(%arg0: i32) -> (i32, i32) {
    %c0_i32 = arith.constant 0 : i32
    %c0_i32_0 = arith.constant 0 : i32
    return %arg0, %c0_i32 : i32, i32
  }
}

</mosaic_0001>

<llo_original>
// kernel: residual_block.1
$region0: #{residual_block.1}
  #allocation0 [shape = 'u32[]', space=smem, size = 0x4, offset = 0x4, fixed_abs, tag = 'smem constant byte address 0x4 - core index']
  #allocation1 [shape = 'u32[144,128]{1,0:T(1,128)}', space=vmem, size = 0x12000, scoped, tag = 'internal scratch']
  %s0 = inlined_call_operand.vmem [shape: bf16[256,128], index: 0, kind: input, shape index: {}]
  %s1 = inlined_call_operand.vmem [shape: bf16[128,128], index: 1, kind: input, shape index: {}]
  %s2 = inlined_call_operand.vmem [shape: bf16[128,128], index: 2, kind: input, shape index: {}]
  %s3 = inlined_call_operand.vmem [shape: f32[2,128], index: 3, kind: input, shape index: {}]
  %s4 = inlined_call_operand.hbm [shape: bf16[256,128], index: 4, kind: output, shape index: {}]
  %s5 = sld [smem:[#allocation0]]
  $region49: #{residual_block.1} parent=0
    _
  %s7 = ssub.s32 1, %s5
  %s8 = scalar_select 0, %s7, %s5
  $region1: #{residual_block.1} parent=0
    #allocation2 [shape = 'u8[65536]{0}', space=vmem, size = 0x10000, scoped, tag = 'output window, operand 0']
    #allocation3 [shape = 's32[2]{0}', space=sflag, size = 0x8, scoped, tag = 'scoped memory for residual_block.1']
    %9 = vsyncpa [#allocation3], 0
    %s10 = scalar_lea.sflag [#allocation3], 1
    %11 = vsyncpa %s10, 0
    loop: start=0, step=1, limit=4
    $region2: #{residual_block.1} parent=1 // loop_pre_header
      _
    $region3: #{residual_block.1} parent=1 // loop_header
      %s13 = sphi 0, %s17
      %p14 = scmp.ge.s32.totalorder %s13, 4
      %s23 = sphi 0, %s25
      %s26 = sphi 0, %s23
      %s27 = sphi 0, %s26
      %s43 = sphi 0, %s27
      %s47 = sphi 0, %s47
      %s49 = sphi 0, %s47
      %s50 = sphi 0, %s49
      %s64 = sphi 0, %s50
      %s68 = sphi 0, %s68
      %s70 = sphi 0, %s68
      %s71 = sphi 0, %s70
      %s85 = sphi 0, %s71
      %s89 = sphi 0, %s89
      %s91 = sphi 0, %s89
      %s92 = sphi 0, %s91
      %s106 = sphi 0, %s92
      %s112 = sphi 0, %s114
      %s115 = sphi 0, %s112
      %s116 = sphi 0, %s115
      %s132 = sphi 0, %s116
    $region4: #{residual_block.1} parent=1 // loop_header_branch
      %16 = sbr.rel (%p14) target = $region8
    $region5: #{residual_block.1} parent=1 // loop_body
      %s18 = ssub.s32 %s13, 1
      %s19 = ssub.s32 %s13, 2
      %s20 = sadd.s32 %s13, 1
      %s21 = ssub.s32 %s13, %s20
      %p22 = scmp.eq.s32.totalorder %s21, 0
      %s24 = sadd.s32 %s23, 1
      %s25 = scalar_select %p22, %s23, %s24
      %p28 = pneg %p22
      %p29 = scmp.eq.s32.totalorder %s13, 1
      %p30 = por %p28, %p29
      %p31 = scmp.ne.s32.totalorder %s23, %s26
      %p32 = scmp.eq.s32.totalorder %s13, 0
      %p33 = por %p31, %p32
      %p34 = scmp.ne.s32.totalorder %s23, %s26
      %p35 = scmp.eq.s32.totalorder %s18, 1
      %p36 = por %p34, %p35
      %p37 = scmp.ne.s32.totalorder %s26, %s27
      %p38 = scmp.eq.s32.totalorder %s18, 0
      %p39 = por %p37, %p38
      %p40 = scmp.ne.s32.totalorder %s26, %s27
      %p41 = scmp.eq.s32.totalorder %s19, 1
      %p42 = por %p40, %p41
      %p44 = scmp.ne.s32.totalorder %s27, %s43
      %p45 = scmp.eq.s32.totalorder %s19, 0
      %p46 = por %p44, %p45
      %s48 = sadd.s32 %s47, 1
      %p51 = scmp.eq.s32.totalorder %s13, 1
      %p52 = scmp.ne.s32.totalorder %s47, %s49
      %p53 = scmp.eq.s32.totalorder %s13, 0
      %p54 = por %p52, %p53
      %p55 = scmp.ne.s32.totalorder %s47, %s49
      %p56 = scmp.eq.s32.totalorder %s18, 1
      %p57 = por %p55, %p56
      %p58 = scmp.ne.s32.totalorder %s49, %s50
      %p59 = scmp.eq.s32.totalorder %s18, 0
      %p60 = por %p58, %p59
      %p61 = scmp.ne.s32.totalorder %s49, %s50
      %p62 = scmp.eq.s32.totalorder %s19, 1
      %p63 = por %p61, %p62
      %p65 = scmp.ne.s32.totalorder %s50, %s64
      %p66 = scmp.eq.s32.totalorder %s19, 0
      %p67 = por %p65, %p66
      %s69 = sadd.s32 %s68, 1
      %p72 = scmp.eq.s32.totalorder %s13, 1
      %p73 = scmp.ne.s32.totalorder %s68, %s70
      %p74 = scmp.eq.s32.totalorder %s13, 0
      %p75 = por %p73, %p74
      %p76 = scmp.ne.s32.totalorder %s68, %s70
      %p77 = scmp.eq.s32.totalorder %s18, 1
      %p78 = por %p76, %p77
      %p79 = scmp.ne.s32.totalorder %s70, %s71
      %p80 = scmp.eq.s32.totalorder %s18, 0
      %p81 = por %p79, %p80
      %p82 = scmp.ne.s32.totalorder %s70, %s71
      %p83 = scmp.eq.s32.totalorder %s19, 1
      %p84 = por %p82, %p83
      %p86 = scmp.ne.s32.totalorder %s71, %s85
      %p87 = scmp.eq.s32.totalorder %s19, 0
      %p88 = por %p86, %p87
      %s90 = sadd.s32 %s89, 1
      %p93 = scmp.eq.s32.totalorder %s13, 1
      %p94 = scmp.ne.s32.totalorder %s89, %s91
      %p95 = scmp.eq.s32.totalorder %s13, 0
      %p96 = por %p94, %p95
      %p97 = scmp.ne.s32.totalorder %s89, %s91
      %p98 = scmp.eq.s32.totalorder %s18, 1
      %p99 = por %p97, %p98
      %p100 = scmp.ne.s32.totalorder %s91, %s92
      %p101 = scmp.eq.s32.totalorder %s18, 0
      %p102 = por %p100, %p101
      %p103 = scmp.ne.s32.totalorder %s91, %s92
      %p104 = scmp.eq.s32.totalorder %s19, 1
      %p105 = por %p103, %p104
      %p107 = scmp.ne.s32.totalorder %s92, %s106
      %p108 = scmp.eq.s32.totalorder %s19, 0
      %p109 = por %p107, %p108
      %s110 = ssub.s32 %s13, %s20
      %p111 = scmp.eq.s32.totalorder %s110, 0
      %s113 = sadd.s32 %s112, 1
      %s114 = scalar_select %p111, %s112, %s113
      %p117 = pneg %p111
      %p118 = scmp.eq.s32.totalorder %s13, 1
      %p119 = por %p117, %p118
      %p120 = scmp.ne.s32.totalorder %s112, %s115
      %p121 = scmp.eq.s32.totalorder %s13, 0
      %p122 = por %p120, %p121
      %p123 = scmp.ne.s32.totalorder %s112, %s115
      %p124 = scmp.eq.s32.totalorder %s18, 1
      %p125 = por %p123, %p124
      %p126 = scmp.ne.s32.totalorder %s115, %s116
      %p127 = scmp.eq.s32.totalorder %s18, 0
      %p128 = por %p126, %p127
      %p129 = scmp.ne.s32.totalorder %s115, %s116
      %p130 = scmp.eq.s32.totalorder %s19, 1
      %p131 = por %p129, %p130
      %p133 = scmp.ne.s32.totalorder %s116, %s132
      %p134 = scmp.eq.s32.totalorder %s19, 0
      %p135 = por %p133, %p134
      %p136 = scmp.le.s32.totalorder 1, %s13
      %p137 = scmp.lt.s32.totalorder %s13, 3
      %p138 = pnand %p136, %p137
      %p139 = pneg %p138
      // Predicated region
      $region9: #{residual_block.1} parent=5 // pred_check
        _
      $region10: #{residual_block.1} parent=5 // pred_check_branch
        %141 = sbr.rel (%p138) target = $region12
      $region11: #{residual_block.1} parent=5 // pred_region
        %s142 = ssub.s32 %s13, 1
        // Predicated region
        $region13: #{residual_block.1} parent=11 // pred_check
          %p143 = pneg %p60
        $region14: #{residual_block.1} parent=11 // pred_check_branch
          %145 = sbr.rel (%p143) target = $region16
        $region15: #{residual_block.1} parent=11 // pred_region
          _
        $region16: #{residual_block.1} parent=11 // pred_fallthru
          _
        // Predicated region
        $region17: #{residual_block.1} parent=11 // pred_check
          %p146 = pneg %p81
        $region18: #{residual_block.1} parent=11 // pred_check_branch
          %148 = sbr.rel (%p146) target = $region20
        $region19: #{residual_block.1} parent=11 // pred_region
          _
        $region20: #{residual_block.1} parent=11 // pred_fallthru
          _
        // Predicated region
        $region21: #{residual_block.1} parent=11 // pred_check
          %p149 = pneg %p102
        $region22: #{residual_block.1} parent=11 // pred_check_branch
          %151 = sbr.rel (%p149) target = $region24
        $region23: #{residual_block.1} parent=11 // pred_region
          _
        $region24: #{residual_block.1} parent=11 // pred_fallthru
          _
      $region12: #{residual_block.1} parent=5 // pred_fallthru
        _
      %p152 = scmp.lt.s32.totalorder %s13, 2
      // Predicated region
      $region25: #{residual_block.1} parent=5 // pred_check
        %p153 = pneg %p152
      $region26: #{residual_block.1} parent=5 // pred_check_branch
        %155 = sbr.rel (%p153) target = $region28
      $region27: #{residual_block.1} parent=5 // pred_region
        // Predicated region
        $region29: #{residual_block.1} parent=27 // pred_check
          %p156 = pneg %p33
        $region30: #{residual_block.1} parent=27 // pred_check_branch
          %158 = sbr.rel (%p156) target = $region32
        $region31: #{residual_block.1} parent=27 // pred_region
          %s159 = smul.u32 16, %s13
          %p160 = scmp.lt.s32.totalorder %s159, 31
          %s161 = scalar_select %p160, %s159, 31
          %s162 = smul.addr %s161, 4
          %s163 = scalar_lea.vmem %s0, %s162
          %s164 = smul.u32 16, %s13
        $region32: #{residual_block.1} parent=27 // pred_fallthru
          _
      $region28: #{residual_block.1} parent=5 // pred_fallthru
        _
      %p165 = scmp.le.s32.totalorder 1, %s13
      %p166 = scmp.lt.s32.totalorder %s13, 3
      %p167 = pnand %p165, %p166
      %p168 = pneg %p167
      // Predicated region
      $region33: #{residual_block.1} parent=5 // pred_check
        _
      $region34: #{residual_block.1} parent=5 // pred_check_branch
        %170 = sbr.rel (%p167) target = $region36
      $region35: #{residual_block.1} parent=5 // pred_region
        %s171 = ssub.s32 %s13, 1
        %s172 = smul.u32 16, %s18
        %p173 = scmp.lt.s32.totalorder %s172, 31
        %s174 = scalar_select %p173, %s172, 31
        %s175 = smul.addr %s174, 4
        %s176 = scalar_lea.vmem %s0, %s175
        %p177 = pneg %p39
        %p178 = pneg %p36
        %p179 = pneg %p60
        %p180 = pneg %p57
        %p181 = pneg %p81
        %p182 = pneg %p78
        %p183 = pneg %p102
        %p184 = pneg %p99
        %p185 = pneg %p128
        %p186 = pneg %p125
        %s187 = sand.u32 %s115, 1
        %s188 = scalar_lea.sflag [#allocation3], %s187
        %s189 = sand.u32 %s115, 1
        %s190 = smul.addr %s189, 64
        %s191 = scalar_lea.vmem [#allocation2], %s190
        %s192 = smul.u32 16, %s18
        %p193 = scmp.lt.s32.totalorder %s192, 31
        %s194 = scalar_select %p193, %s192, 31
        %s195 = smul.addr %s194, 4
        %s196 = scalar_lea.vmem %s0, %s195
        %s197 = smul.u32 16, %s18
        %s198 = smul.u32 16, %s18
        %v200 = vld [vmem:[%s196] sm:$0xf]
        %v201 = vld [vmem:[%s196 + $0x4] sm:$0xf]
        %v202 = vld [vmem:[%s196 + $0x8] sm:$0xf]
        %v203 = vld [vmem:[%s196 + $0xc] sm:$0xf]
        %v204 = vld [vmem:[%s196 + $0x10] sm:$0xf]
        %v205 = vld [vmem:[%s196 + $0x14] sm:$0xf]
        %v206 = vld [vmem:[%s196 + $0x18] sm:$0xf]
        %v207 = vld [vmem:[%s196 + $0x1c] sm:$0xf]
        %v208 = vld [vmem:[%s196 + $0x20] sm:$0xf]
        %v209 = vld [vmem:[%s196 + $0x24] sm:$0xf]
        %v210 = vld [vmem:[%s196 + $0x28] sm:$0xf]
        %v211 = vld [vmem:[%s196 + $0x2c] sm:$0xf]
        %v212 = vld [vmem:[%s196 + $0x30] sm:$0xf]
        %v213 = vld [vmem:[%s196 + $0x34] sm:$0xf]
        %v214 = vld [vmem:[%s196 + $0x38] sm:$0xf]
        %v215 = vld [vmem:[%s196 + $0x3c] sm:$0xf]
        %v216 = vunpack.c.l.bf16 %v200
        %v217 = vunpack.c.l.bf16 %v201
        %v218 = vunpack.c.l.bf16 %v202
        %v219 = vunpack.c.l.bf16 %v203
        %v220 = vunpack.c.l.bf16 %v204
        %v221 = vunpack.c.l.bf16 %v205
        %v222 = vunpack.c.l.bf16 %v206
        %v223 = vunpack.c.l.bf16 %v207
        %v224 = vunpack.c.l.bf16 %v208
        %v225 = vunpack.c.l.bf16 %v209
        %v226 = vunpack.c.l.bf16 %v210
        %v227 = vunpack.c.l.bf16 %v211
        %v228 = vunpack.c.l.bf16 %v212
        %v229 = vunpack.c.l.bf16 %v213
        %v230 = vunpack.c.l.bf16 %v214
        %v231 = vunpack.c.l.bf16 %v215
        %v232 = vld [vmem:[%s3] sm:$0x1]
        %v233 = vld [vmem:[%s3 + $0x1] sm:$0x1]
        %234 = vadd.xlane.f32.xlu0 %v216
        %v235 = vpop.xlane.xlu0 %234
        %236 = vadd.xlane.f32.xlu0 %v217
        %v237 = vpop.xlane.xlu0 %236
        %238 = vadd.xlane.f32.xlu0 %v218
        %v239 = vpop.xlane.xlu0 %238
        %240 = vadd.xlane.f32.xlu0 %v219
        %v241 = vpop.xlane.xlu0 %240
        %242 = vadd.xlane.f32.xlu0 %v220
        %v243 = vpop.xlane.xlu0 %242
        %244 = vadd.xlane.f32.xlu0 %v221
        %v245 = vpop.xlane.xlu0 %244
        %246 = vadd.xlane.f32.xlu0 %v222
        %v247 = vpop.xlane.xlu0 %246
        %248 = vadd.xlane.f32.xlu0 %v223
        %v249 = vpop.xlane.xlu0 %248
        %250 = vadd.xlane.f32.xlu0 %v224
        %v251 = vpop.xlane.xlu0 %250
        %252 = vadd.xlane.f32.xlu0 %v225
        %v253 = vpop.xlane.xlu0 %252
        %254 = vadd.xlane.f32.xlu0 %v226
        %v255 = vpop.xlane.xlu0 %254
        %256 = vadd.xlane.f32.xlu0 %v227
        %v257 = vpop.xlane.xlu0 %256
        %258 = vadd.xlane.f32.xlu0 %v228
        %v259 = vpop.xlane.xlu0 %258
        %260 = vadd.xlane.f32.xlu0 %v229
        %v261 = vpop.xlane.xlu0 %260
        %262 = vadd.xlane.f32.xlu0 %v230
        %v263 = vpop.xlane.xlu0 %262
        %264 = vadd.xlane.f32.xlu0 %v231
        %v265 = vpop.xlane.xlu0 %264
        %v266 = vrcp.pop 128.0
        %v267 = vmul.f32 %v235, %v266
        %v268 = vmul.f32 %v237, %v266
        %v269 = vmul.f32 %v239, %v266
        %v270 = vmul.f32 %v241, %v266
        %v271 = vmul.f32 %v243, %v266
        %v272 = vmul.f32 %v245, %v266
        %v273 = vmul.f32 %v247, %v266
        %v274 = vmul.f32 %v249, %v266
        %v275 = vmul.f32 %v251, %v266
        %v276 = vmul.f32 %v253, %v266
        %v277 = vmul.f32 %v255, %v266
        %v278 = vmul.f32 %v257, %v266
        %v279 = vmul.f32 %v259, %v266
        %v280 = vmul.f32 %v261, %v266
        %v281 = vmul.f32 %v263, %v266
        %v282 = vmul.f32 %v265, %v266
        %v283 = vmul.f32 %v216, %v216
        %v284 = vmul.f32 %v217, %v217
        %v285 = vmul.f32 %v218, %v218
        %v286 = vmul.f32 %v219, %v219
        %v287 = vmul.f32 %v220, %v220
        %v288 = vmul.f32 %v221, %v221
        %v289 = vmul.f32 %v222, %v222
        %v290 = vmul.f32 %v223, %v223
        %v291 = vmul.f32 %v224, %v224
        %v292 = vmul.f32 %v225, %v225
        %v293 = vmul.f32 %v226, %v226
        %v294 = vmul.f32 %v227, %v227
        %v295 = vmul.f32 %v228, %v228
        %v296 = vmul.f32 %v229, %v229
        %v297 = vmul.f32 %v230, %v230
        %v298 = vmul.f32 %v231, %v231
        %299 = vadd.xlane.f32.xlu0 %v283
        %v300 = vpop.xlane.xlu0 %299
        %301 = vadd.xlane.f32.xlu0 %v284
        %v302 = vpop.xlane.xlu0 %301
        %303 = vadd.xlane.f32.xlu0 %v285
        %v304 = vpop.xlane.xlu0 %303
        %305 = vadd.xlane.f32.xlu0 %v286
        %v306 = vpop.xlane.xlu0 %305
        %307 = vadd.xlane.f32.xlu0 %v287
        %v308 = vpop.xlane.xlu0 %307
        %309 = vadd.xlane.f32.xlu0 %v288
        %v310 = vpop.xlane.xlu0 %309
        %311 = vadd.xlane.f32.xlu0 %v289
        %v312 = vpop.xlane.xlu0 %311
        %313 = vadd.xlane.f32.xlu0 %v290
        %v314 = vpop.xlane.xlu0 %313
        %315 = vadd.xlane.f32.xlu0 %v291
        %v316 = vpop.xlane.xlu0 %315
        %317 = vadd.xlane.f32.xlu0 %v292
        %v318 = vpop.xlane.xlu0 %317
        %319 = vadd.xlane.f32.xlu0 %v293
        %v320 = vpop.xlane.xlu0 %319
        %321 = vadd.xlane.f32.xlu0 %v294
        %v322 = vpop.xlane.xlu0 %321
        %323 = vadd.xlane.f32.xlu0 %v295
        %v324 = vpop.xlane.xlu0 %323
        %325 = vadd.xlane.f32.xlu0 %v296
        %v326 = vpop.xlane.xlu0 %325
        %327 = vadd.xlane.f32.xlu0 %v297
        %v328 = vpop.xlane.xlu0 %327
        %329 = vadd.xlane.f32.xlu0 %v298
        %v330 = vpop.xlane.xlu0 %329
        %v331 = vmul.f32 %v300, %v266
        %v332 = vmul.f32 %v302, %v266
        %v333 = vmul.f32 %v304, %v266
        %v334 = vmul.f32 %v306, %v266
        %v335 = vmul.f32 %v308, %v266
        %v336 = vmul.f32 %v310, %v266
        %v337 = vmul.f32 %v312, %v266
        %v338 = vmul.f32 %v314, %v266
        %v339 = vmul.f32 %v316, %v266
        %v340 = vmul.f32 %v318, %v266
        %v341 = vmul.f32 %v320, %v266
        %v342 = vmul.f32 %v322, %v266
        %v343 = vmul.f32 %v324, %v266
        %v344 = vmul.f32 %v326, %v266
        %v345 = vmul.f32 %v328, %v266
        %v346 = vmul.f32 %v330, %v266
        %v347 = vmul.f32 %v267, %v267
        %v348 = vmul.f32 %v268, %v268
        %v349 = vmul.f32 %v269, %v269
        %v350 = vmul.f32 %v270, %v270
        %v351 = vmul.f32 %v271, %v271
        %v352 = vmul.f32 %v272, %v272
        %v353 = vmul.f32 %v273, %v273
        %v354 = vmul.f32 %v274, %v274
        %v355 = vmul.f32 %v275, %v275
        %v356 = vmul.f32 %v276, %v276
        %v357 = vmul.f32 %v277, %v277
        %v358 = vmul.f32 %v278, %v278
        %v359 = vmul.f32 %v279, %v279
        %v360 = vmul.f32 %v280, %v280
        %v361 = vmul.f32 %v281, %v281
        %v362 = vmul.f32 %v282, %v282
        %v363 = vsub.f32 %v331, %v347
        %v364 = vsub.f32 %v332, %v348
        %v365 = vsub.f32 %v333, %v349
        %v366 = vsub.f32 %v334, %v350
        %v367 = vsub.f32 %v335, %v351
        %v368 = vsub.f32 %v336, %v352
        %v369 = vsub.f32 %v337, %v353
        %v370 = vsub.f32 %v338, %v354
        %v371 = vsub.f32 %v339, %v355
        %v372 = vsub.f32 %v340, %v356
        %v373 = vsub.f32 %v341, %v357
        %v374 = vsub.f32 %v342, %v358
        %v375 = vsub.f32 %v343, %v359
        %v376 = vsub.f32 %v344, %v360
        %v377 = vsub.f32 %v345, %v361
        %v378 = vsub.f32 %v346, %v362
        %v379 = vsub.f32 %v216, %v267
        %v380 = vsub.f32 %v217, %v268
        %v381 = vsub.f32 %v218, %v269
        %v382 = vsub.f32 %v219, %v270
        %v383 = vsub.f32 %v220, %v271
        %v384 = vsub.f32 %v221, %v272
        %v385 = vsub.f32 %v222, %v273
        %v386 = vsub.f32 %v223, %v274
        %v387 = vsub.f32 %v224, %v275
        %v388 = vsub.f32 %v225, %v276
        %v389 = vsub.f32 %v226, %v277
        %v390 = vsub.f32 %v227, %v278
        %v391 = vsub.f32 %v228, %v279
        %v392 = vsub.f32 %v229, %v280
        %v393 = vsub.f32 %v230, %v281
        %v394 = vsub.f32 %v231, %v282
        %v395 = vadd.f32 %v363, 1e-05
        %v396 = vadd.f32 %v364, 1e-05
        %v397 = vadd.f32 %v365, 1e-05
        %v398 = vadd.f32 %v366, 1e-05
        %v399 = vadd.f32 %v367, 1e-05
        %v400 = vadd.f32 %v368, 1e-05
        %v401 = vadd.f32 %v369, 1e-05
        %v402 = vadd.f32 %v370, 1e-05
        %v403 = vadd.f32 %v371, 1e-05
        %v404 = vadd.f32 %v372, 1e-05
        %v405 = vadd.f32 %v373, 1e-05
        %v406 = vadd.f32 %v374, 1e-05
        %v407 = vadd.f32 %v375, 1e-05
        %v408 = vadd.f32 %v376, 1e-05
        %v409 = vadd.f32 %v377, 1e-05
        %v410 = vadd.f32 %v378, 1e-05
        %v411 = vrsqrt.pop %v395
        %v412 = vrsqrt.pop %v396
        %v413 = vrsqrt.pop %v397
        %v414 = vrsqrt.pop %v398
        %v415 = vrsqrt.pop %v399
        %v416 = vrsqrt.pop %v400
        %v417 = vrsqrt.pop %v401
        %v418 = vrsqrt.pop %v402
        %v419 = vrsqrt.pop %v403
        %v420 = vrsqrt.pop %v404
        %v421 = vrsqrt.pop %v405
        %v422 = vrsqrt.pop %v406
        %v423 = vrsqrt.pop %v407
        %v424 = vrsqrt.pop %v408
        %v425 = vrsqrt.pop %v409
        %v426 = vrsqrt.pop %v410
        %v427 = vmul.f32 %v379, %v411
        %v428 = vmul.f32 %v380, %v412
        %v429 = vmul.f32 %v381, %v413
        %v430 = vmul.f32 %v382, %v414
        %v431 = vmul.f32 %v383, %v415
        %v432 = vmul.f32 %v384, %v416
        %v433 = vmul.f32 %v385, %v417
        %v434 = vmul.f32 %v386, %v418
        %v435 = vmul.f32 %v387, %v419
        %v436 = vmul.f32 %v388, %v420
        %v437 = vmul.f32 %v389, %v421
        %v438 = vmul.f32 %v390, %v422
        %v439 = vmul.f32 %v391, %v423
        %v440 = vmul.f32 %v392, %v424
        %v441 = vmul.f32 %v393, %v425
        %v442 = vmul.f32 %v394, %v426
        %v443 = vpack.c.bf16 %v428, %v427
        %v444 = vpack.c.bf16 %v430, %v429
        %v445 = vpack.c.bf16 %v432, %v431
        %v446 = vpack.c.bf16 %v434, %v433
        %v447 = vpack.c.bf16 %v436, %v435
        %v448 = vpack.c.bf16 %v438, %v437
        %v449 = vpack.c.bf16 %v440, %v439
        %v450 = vpack.c.bf16 %v442, %v441
        %v451 = vld [vmem:[%s1] sm:$0xf]
        %v452 = vld [vmem:[%s1 + $0x4] sm:$0xf]
        %v453 = vld [vmem:[%s1 + $0x8] sm:$0xf]
        %v454 = vld [vmem:[%s1 + $0xc] sm:$0xf]
        %v455 = vld [vmem:[%s1 + $0x10] sm:$0xf]
        %v456 = vld [vmem:[%s1 + $0x14] sm:$0xf]
        %v457 = vld [vmem:[%s1 + $0x18] sm:$0xf]
        %v458 = vld [vmem:[%s1 + $0x1c] sm:$0xf]
        %v459 = vld [vmem:[%s1 + $0x20] sm:$0xf]
        %v460 = vld [vmem:[%s1 + $0x24] sm:$0xf]
        %v461 = vld [vmem:[%s1 + $0x28] sm:$0xf]
        %v462 = vld [vmem:[%s1 + $0x2c] sm:$0xf]
        %v463 = vld [vmem:[%s1 + $0x30] sm:$0xf]
        %v464 = vld [vmem:[%s1 + $0x34] sm:$0xf]
        %v465 = vld [vmem:[%s1 + $0x38] sm:$0xf]
        %v466 = vld [vmem:[%s1 + $0x3c] sm:$0xf]
        %v467 = vlaneseq
        %v468 = vshrl.u32 %v467, 7
        %v469 = vsub.s32 0, %v468
        %v470 = vrot.slane %v232, %v469
        %v487 = vunpack.c.l.b16 %v451
        %v488 = vunpack.c.l.b16 %v452
        %v489 = vunpack.c.l.b16 %v453
        %v490 = vunpack.c.l.b16 %v454
        %v491 = vunpack.c.l.b16 %v455
        %v492 = vunpack.c.l.b16 %v456
        %v493 = vunpack.c.l.b16 %v457
        %v494 = vunpack.c.l.b16 %v458
        %v495 = vunpack.c.l.b16 %v459
        %v496 = vunpack.c.l.b16 %v460
        %v497 = vunpack.c.l.b16 %v461
        %v498 = vunpack.c.l.b16 %v462
        %v499 = vunpack.c.l.b16 %v463
        %v500 = vunpack.c.l.b16 %v464
        %v501 = vunpack.c.l.b16 %v465
        %v502 = vunpack.c.l.b16 %v466
        %v503 = vpack.c.b16 %v488, %v487
        %v504 = vpack.c.b16 %v490, %v489
        %v505 = vpack.c.b16 %v492, %v491
        %v506 = vpack.c.b16 %v494, %v493
        %v507 = vpack.c.b16 %v496, %v495
        %v508 = vpack.c.b16 %v498, %v497
        %v509 = vpack.c.b16 %v500, %v499
        %v510 = vpack.c.b16 %v502, %v501
        %519 = vmatprep.subr.bf16.mxu0 0
        %520 = vmatpush1.bf16.msra.mxu0 %v503
        %521 = vmatprep.subr.bf16.mxu0 0
        %522 = vmatpush1.bf16.msra.mxu0 %v504
        %523 = vmatprep.subr.bf16.mxu0 0
        %524 = vmatpush1.bf16.msra.mxu0 %v505
        %525 = vmatprep.subr.bf16.mxu0 0
        %526 = vmatpush1.bf16.msra.mxu0 %v506
        %527 = vmatprep.subr.bf16.mxu0 0
        %528 = vmatpush1.bf16.msra.mxu0 %v507
        %529 = vmatprep.subr.bf16.mxu0 0
        %530 = vmatpush1.bf16.msra.mxu0 %v508
        %531 = vmatprep.subr.bf16.mxu0 0
        %532 = vmatpush1.bf16.msra.mxu0 %v509
        %533 = vmatprep.subr.bf16.mxu0 0
        %534 = vmatpush1.bf16.msra.mxu0 %v510
        %535 = vmatprep.subr.bf16.mxu0 0
        %536 = vmatpush1.bf16.msra.mxu0 0
        %537 = vmatprep.subr.bf16.mxu0 0
        %538 = vmatpush1.bf16.msra.mxu0 0
        %539 = vmatprep.subr.bf16.mxu0 0
        %540 = vmatpush1.bf16.msra.mxu0 0
        %541 = vmatprep.subr.bf16.mxu0 0
        %542 = vmatpush1.bf16.msra.mxu0 0
        %543 = vmatprep.subr.bf16.mxu0 0
        %544 = vmatpush1.bf16.msra.mxu0 0
        %545 = vmatprep.subr.bf16.mxu0 0
        %546 = vmatpush1.bf16.msra.mxu0 0
        %547 = vmatprep.subr.bf16.mxu0 0
        %548 = vmatpush1.bf16.msra.mxu0 0
        %549 = vmatprep.subr.bf16.mxu0 0
        %550 = vmatpush1.bf16.msra.mxu0 0
        %551 = vmatprep.mubr.bf16.mxu0 0
        %552 = vmatmul.mubr.bf16.gmra.mrb[0].mxu0 %v443
        %v553 = vpop.f32.mrb[0].mxu0
        %v554 = vadd.f32 %v470, %v553
        %v555 = vpop.f32.mrb[0].mxu0
        %v556 = vpop.f32.mrb[0].mxu0
        %v557 = vadd.f32 %v470, %v556
        %v558 = vpop.f32.mrb[0].mxu0
        %559 = vmatprep.mubr.bf16.mxu0 0
        %560 = vmatmul.mubr.bf16.gmra.mrb[0].mxu0 %v444
        %v561 = vpop.f32.mrb[0].mxu0
        %v562 = vadd.f32 %v470, %v561
        %v563 = vpop.f32.mrb[0].mxu0
        %v564 = vpop.f32.mrb[0].mxu0
        %v565 = vadd.f32 %v470, %v564
        %v566 = vpop.f32.mrb[0].mxu0
        %567 = vmatprep.mubr.bf16.mxu0 0
        %568 = vmatmul.mubr.bf16.gmra.mrb[0].mxu0 %v445
        %v569 = vpop.f32.mrb[0].mxu0
        %v570 = vadd.f32 %v470, %v569
        %v571 = vpop.f32.mrb[0].mxu0
        %v572 = vpop.f32.mrb[0].mxu0
        %v573 = vadd.f32 %v470, %v572
        %v574 = vpop.f32.mrb[0].mxu0
        %575 = vmatprep.mubr.bf16.mxu0 0
        %576 = vmatmul.mubr.bf16.gmra.mrb[0].mxu0 %v446
        %v577 = vpop.f32.mrb[0].mxu0
        %v578 = vadd.f32 %v470, %v577
        %v579 = vpop.f32.mrb[0].mxu0
        %v580 = vpop.f32.mrb[0].mxu0
        %v581 = vadd.f32 %v470, %v580
        %v582 = vpop.f32.mrb[0].mxu0
        %583 = vmatprep.mubr.bf16.mxu0 0
        %584 = vmatmul.mubr.bf16.gmra.mrb[0].mxu0 %v447
        %v585 = vpop.f32.mrb[0].mxu0
        %v586 = vadd.f32 %v470, %v585
        %v587 = vpop.f32.mrb[0].mxu0
        %v588 = vpop.f32.mrb[0].mxu0
        %v589 = vadd.f32 %v470, %v588
        %v590 = vpop.f32.mrb[0].mxu0
        %591 = vmatprep.mubr.bf16.mxu0 0
        %592 = vmatmul.mubr.bf16.gmra.mrb[0].mxu0 %v448
        %v593 = vpop.f32.mrb[0].mxu0
        %v594 = vadd.f32 %v470, %v593
        %v595 = vpop.f32.mrb[0].mxu0
        %v596 = vpop.f32.mrb[0].mxu0
        %v597 = vadd.f32 %v470, %v596
        %v598 = vpop.f32.mrb[0].mxu0
        %599 = vmatprep.mubr.bf16.mxu0 0
        %600 = vmatmul.mubr.bf16.gmra.mrb[0].mxu0 %v449
        %v601 = vpop.f32.mrb[0].mxu0
        %v602 = vadd.f32 %v470, %v601
        %v603 = vpop.f32.mrb[0].mxu0
        %v604 = vpop.f32.mrb[0].mxu0
        %v605 = vadd.f32 %v470, %v604
        %v606 = vpop.f32.mrb[0].mxu0
        %607 = vmatprep.mubr.bf16.mxu0 0
        %608 = vmatmul.mubr.bf16.gmra.mrb[0].mxu0 %v450
        %v609 = vpop.f32.mrb[0].mxu0
        %v610 = vadd.f32 %v470, %v609
        %v611 = vpop.f32.mrb[0].mxu0
        %v612 = vpop.f32.mrb[0].mxu0
        %v613 = vadd.f32 %v470, %v612
        %v614 = vpop.f32.mrb[0].mxu0
        %615 = vdwg.mxu0
        %v616 = vmul.f32 %v554, 0.1
        %v617 = vmul.f32 %v557, 0.1
        %v618 = vmul.f32 %v562, 0.1
        %v619 = vmul.f32 %v565, 0.1
        %v620 = vmul.f32 %v570, 0.1
        %v621 = vmul.f32 %v573, 0.1
        %v622 = vmul.f32 %v578, 0.1
        %v623 = vmul.f32 %v581, 0.1
        %v624 = vmul.f32 %v586, 0.1
        %v625 = vmul.f32 %v589, 0.1
        %v626 = vmul.f32 %v594, 0.1
        %v627 = vmul.f32 %v597, 0.1
        %v628 = vmul.f32 %v602, 0.1
        %v629 = vmul.f32 %v605, 0.1
        %v630 = vmul.f32 %v610, 0.1
        %v631 = vmul.f32 %v613, 0.1
        %v632 = vmax.f32 %v554, %v616
        %v633 = vmax.f32 %v557, %v617
        %v634 = vmax.f32 %v562, %v618
        %v635 = vmax.f32 %v565, %v619
        %v636 = vmax.f32 %v570, %v620
        %v637 = vmax.f32 %v573, %v621
        %v638 = vmax.f32 %v578, %v622
        %v639 = vmax.f32 %v581, %v623
        %v640 = vmax.f32 %v586, %v624
        %v641 = vmax.f32 %v589, %v625
        %v642 = vmax.f32 %v594, %v626
        %v643 = vmax.f32 %v597, %v627
        %v644 = vmax.f32 %v602, %v628
        %v645 = vmax.f32 %v605, %v629
        %v646 = vmax.f32 %v610, %v630
        %v647 = vmax.f32 %v613, %v631
        %648 = vadd.xlane.f32.xlu0 %v632
        %v649 = vpop.xlane.xlu0 %648
        %650 = vadd.xlane.f32.xlu0 %v633
        %v651 = vpop.xlane.xlu0 %650
        %652 = vadd.xlane.f32.xlu0 %v634
        %v653 = vpop.xlane.xlu0 %652
        %654 = vadd.xlane.f32.xlu0 %v635
        %v655 = vpop.xlane.xlu0 %654
        %656 = vadd.xlane.f32.xlu0 %v636
        %v657 = vpop.xlane.xlu0 %656
        %658 = vadd.xlane.f32.xlu0 %v637
        %v659 = vpop.xlane.xlu0 %658
        %660 = vadd.xlane.f32.xlu0 %v638
        %v661 = vpop.xlane.xlu0 %660
        %662 = vadd.xlane.f32.xlu0 %v639
        %v663 = vpop.xlane.xlu0 %662
        %664 = vadd.xlane.f32.xlu0 %v640
        %v665 = vpop.xlane.xlu0 %664
        %666 = vadd.xlane.f32.xlu0 %v641
        %v667 = vpop.xlane.xlu0 %666
        %668 = vadd.xlane.f32.xlu0 %v642
        %v669 = vpop.xlane.xlu0 %668
        %670 = vadd.xlane.f32.xlu0 %v643
        %v671 = vpop.xlane.xlu0 %670
        %672 = vadd.xlane.f32.xlu0 %v644
        %v673 = vpop.xlane.xlu0 %672
        %674 = vadd.xlane.f32.xlu0 %v645
        %v675 = vpop.xlane.xlu0 %674
        %676 = vadd.xlane.f32.xlu0 %v646
        %v677 = vpop.xlane.xlu0 %676
        %678 = vadd.xlane.f32.xlu0 %v647
        %v679 = vpop.xlane.xlu0 %678
        %v680 = vmul.f32 %v649, %v266
        %v681 = vmul.f32 %v651, %v266
        %v682 = vmul.f32 %v653, %v266
        %v683 = vmul.f32 %v655, %v266
        %v684 = vmul.f32 %v657, %v266
        %v685 = vmul.f32 %v659, %v266
        %v686 = vmul.f32 %v661, %v266
        %v687 = vmul.f32 %v663, %v266
        %v688 = vmul.f32 %v665, %v266
        %v689 = vmul.f32 %v667, %v266
        %v690 = vmul.f32 %v669, %v266
        %v691 = vmul.f32 %v671, %v266
        %v692 = vmul.f32 %v673, %v266
        %v693 = vmul.f32 %v675, %v266
        %v694 = vmul.f32 %v677, %v266
        %v695 = vmul.f32 %v679, %v266
        %v696 = vmul.f32 %v632, %v632
        %v697 = vmul.f32 %v633, %v633
        %v698 = vmul.f32 %v634, %v634
        %v699 = vmul.f32 %v635, %v635
        %v700 = vmul.f32 %v636, %v636
        %v701 = vmul.f32 %v637, %v637
        %v702 = vmul.f32 %v638, %v638
        %v703 = vmul.f32 %v639, %v639
        %v704 = vmul.f32 %v640, %v640
        %v705 = vmul.f32 %v641, %v641
        %v706 = vmul.f32 %v642, %v642
        %v707 = vmul.f32 %v643, %v643
        %v708 = vmul.f32 %v644, %v644
        %v709 = vmul.f32 %v645, %v645
        %v710 = vmul.f32 %v646, %v646
        %v711 = vmul.f32 %v647, %v647
        %712 = vadd.xlane.f32.xlu0 %v696
        %v713 = vpop.xlane.xlu0 %712
        %714 = vadd.xlane.f32.xlu0 %v697
        %v715 = vpop.xlane.xlu0 %714
        %716 = vadd.xlane.f32.xlu0 %v698
        %v717 = vpop.xlane.xlu0 %716
        %718 = vadd.xlane.f32.xlu0 %v699
        %v719 = vpop.xlane.xlu0 %718
        %720 = vadd.xlane.f32.xlu0 %v700
        %v721 = vpop.xlane.xlu0 %720
        %722 = vadd.xlane.f32.xlu0 %v701
        %v723 = vpop.xlane.xlu0 %722
        %724 = vadd.xlane.f32.xlu0 %v702
        %v725 = vpop.xlane.xlu0 %724
        %726 = vadd.xlane.f32.xlu0 %v703
        %v727 = vpop.xlane.xlu0 %726
        %728 = vadd.xlane.f32.xlu0 %v704
        %v729 = vpop.xlane.xlu0 %728
        %730 = vadd.xlane.f32.xlu0 %v705
        %v731 = vpop.xlane.xlu0 %730
        %732 = vadd.xlane.f32.xlu0 %v706
        %v733 = vpop.xlane.xlu0 %732
        %734 = vadd.xlane.f32.xlu0 %v707
        %v735 = vpop.xlane.xlu0 %734
        %736 = vadd.xlane.f32.xlu0 %v708
        %v737 = vpop.xlane.xlu0 %736
        %738 = vadd.xlane.f32.xlu0 %v709
        %v739 = vpop.xlane.xlu0 %738
        %740 = vadd.xlane.f32.xlu0 %v710
        %v741 = vpop.xlane.xlu0 %740
        %742 = vadd.xlane.f32.xlu0 %v711
        %v743 = vpop.xlane.xlu0 %742
        %v744 = vmul.f32 %v713, %v266
        %v745 = vmul.f32 %v715, %v266
        %v746 = vmul.f32 %v717, %v266
        %v747 = vmul.f32 %v719, %v266
        %v748 = vmul.f32 %v721, %v266
        %v749 = vmul.f32 %v723, %v266
        %v750 = vmul.f32 %v725, %v266
        %v751 = vmul.f32 %v727, %v266
        %v752 = vmul.f32 %v729, %v266
        %v753 = vmul.f32 %v731, %v266
        %v754 = vmul.f32 %v733, %v266
        %v755 = vmul.f32 %v735, %v266
        %v756 = vmul.f32 %v737, %v266
        %v757 = vmul.f32 %v739, %v266
        %v758 = vmul.f32 %v741, %v266
        %v759 = vmul.f32 %v743, %v266
        %v760 = vmul.f32 %v680, %v680
        %v761 = vmul.f32 %v681, %v681
        %v762 = vmul.f32 %v682, %v682
        %v763 = vmul.f32 %v683, %v683
        %v764 = vmul.f32 %v684, %v684
        %v765 = vmul.f32 %v685, %v685
        %v766 = vmul.f32 %v686, %v686
        %v767 = vmul.f32 %v687, %v687
        %v768 = vmul.f32 %v688, %v688
        %v769 = vmul.f32 %v689, %v689
        %v770 = vmul.f32 %v690, %v690
        %v771 = vmul.f32 %v691, %v691
        %v772 = vmul.f32 %v692, %v692
        %v773 = vmul.f32 %v693, %v693
        %v774 = vmul.f32 %v694, %v694
        %v775 = vmul.f32 %v695, %v695
        %v776 = vsub.f32 %v744, %v760
        %v777 = vsub.f32 %v745, %v761
        %v778 = vsub.f32 %v746, %v762
        %v779 = vsub.f32 %v747, %v763
        %v780 = vsub.f32 %v748, %v764
        %v781 = vsub.f32 %v749, %v765
        %v782 = vsub.f32 %v750, %v766
        %v783 = vsub.f32 %v751, %v767
        %v784 = vsub.f32 %v752, %v768
        %v785 = vsub.f32 %v753, %v769
        %v786 = vsub.f32 %v754, %v770
        %v787 = vsub.f32 %v755, %v771
        %v788 = vsub.f32 %v756, %v772
        %v789 = vsub.f32 %v757, %v773
        %v790 = vsub.f32 %v758, %v774
        %v791 = vsub.f32 %v759, %v775
        %v792 = vsub.f32 %v632, %v680
        %v793 = vsub.f32 %v633, %v681
        %v794 = vsub.f32 %v634, %v682
        %v795 = vsub.f32 %v635, %v683
        %v796 = vsub.f32 %v636, %v684
        %v797 = vsub.f32 %v637, %v685
        %v798 = vsub.f32 %v638, %v686
        %v799 = vsub.f32 %v639, %v687
        %v800 = vsub.f32 %v640, %v688
        %v801 = vsub.f32 %v641, %v689
        %v802 = vsub.f32 %v642, %v690
        %v803 = vsub.f32 %v643, %v691
        %v804 = vsub.f32 %v644, %v692
        %v805 = vsub.f32 %v645, %v693
        %v806 = vsub.f32 %v646, %v694
        %v807 = vsub.f32 %v647, %v695
        %v808 = vadd.f32 %v776, 1e-05
        %v809 = vadd.f32 %v777, 1e-05
        %v810 = vadd.f32 %v778, 1e-05
        %v811 = vadd.f32 %v779, 1e-05
        %v812 = vadd.f32 %v780, 1e-05
        %v813 = vadd.f32 %v781, 1e-05
        %v814 = vadd.f32 %v782, 1e-05
        %v815 = vadd.f32 %v783, 1e-05
        %v816 = vadd.f32 %v784, 1e-05
        %v817 = vadd.f32 %v785, 1e-05
        %v818 = vadd.f32 %v786, 1e-05
        %v819 = vadd.f32 %v787, 1e-05
        %v820 = vadd.f32 %v788, 1e-05
        %v821 = vadd.f32 %v789, 1e-05
        %v822 = vadd.f32 %v790, 1e-05
        %v823 = vadd.f32 %v791, 1e-05
        %v824 = vrsqrt.pop %v808
        %v825 = vrsqrt.pop %v809
        %v826 = vrsqrt.pop %v810
        %v827 = vrsqrt.pop %v811
        %v828 = vrsqrt.pop %v812
        %v829 = vrsqrt.pop %v813
        %v830 = vrsqrt.pop %v814
        %v831 = vrsqrt.pop %v815
        %v832 = vrsqrt.pop %v816
        %v833 = vrsqrt.pop %v817
        %v834 = vrsqrt.pop %v818
        %v835 = vrsqrt.pop %v819
        %v836 = vrsqrt.pop %v820
        %v837 = vrsqrt.pop %v821
        %v838 = vrsqrt.pop %v822
        %v839 = vrsqrt.pop %v823
        %v840 = vmul.f32 %v792, %v824
        %v841 = vmul.f32 %v793, %v825
        %v842 = vmul.f32 %v794, %v826
        %v843 = vmul.f32 %v795, %v827
        %v844 = vmul.f32 %v796, %v828
        %v845 = vmul.f32 %v797, %v829
        %v846 = vmul.f32 %v798, %v830
        %v847 = vmul.f32 %v799, %v831
        %v848 = vmul.f32 %v800, %v832
        %v849 = vmul.f32 %v801, %v833
        %v850 = vmul.f32 %v802, %v834
        %v851 = vmul.f32 %v803, %v835
        %v852 = vmul.f32 %v804, %v836
        %v853 = vmul.f32 %v805, %v837
        %v854 = vmul.f32 %v806, %v838
        %v855 = vmul.f32 %v807, %v839
        %v856 = vpack.c.bf16 %v841, %v840
        %v857 = vpack.c.bf16 %v843, %v842
        %v858 = vpack.c.bf16 %v845, %v844
        %v859 = vpack.c.bf16 %v847, %v846
        %v860 = vpack.c.bf16 %v849, %v848
        %v861 = vpack.c.bf16 %v851, %v850
        %v862 = vpack.c.bf16 %v853, %v852
        %v863 = vpack.c.bf16 %v855, %v854
        %v864 = vld [vmem:[%s2] sm:$0xf]
        %v865 = vld [vmem:[%s2 + $0x4] sm:$0xf]
        %v866 = vld [vmem:[%s2 + $0x8] sm:$0xf]
        %v867 = vld [vmem:[%s2 + $0xc] sm:$0xf]
        %v868 = vld [vmem:[%s2 + $0x10] sm:$0xf]
        %v869 = vld [vmem:[%s2 + $0x14] sm:$0xf]
        %v870 = vld [vmem:[%s2 + $0x18] sm:$0xf]
        %v871 = vld [vmem:[%s2 + $0x1c] sm:$0xf]
        %v872 = vld [vmem:[%s2 + $0x20] sm:$0xf]
        %v873 = vld [vmem:[%s2 + $0x24] sm:$0xf]
        %v874 = vld [vmem:[%s2 + $0x28] sm:$0xf]
        %v875 = vld [vmem:[%s2 + $0x2c] sm:$0xf]
        %v876 = vld [vmem:[%s2 + $0x30] sm:$0xf]
        %v877 = vld [vmem:[%s2 + $0x34] sm:$0xf]
        %v878 = vld [vmem:[%s2 + $0x38] sm:$0xf]
        %v879 = vld [vmem:[%s2 + $0x3c] sm:$0xf]
        %v880 = vlaneseq
        %v881 = vshrl.u32 %v880, 7
        %v882 = vsub.s32 0, %v881
        %v883 = vrot.slane %v233, %v882
        %v900 = vunpack.c.l.b16 %v864
        %v901 = vunpack.c.l.b16 %v865
        %v902 = vunpack.c.l.b16 %v866
        %v903 = vunpack.c.l.b16 %v867
        %v904 = vunpack.c.l.b16 %v868
        %v905 = vunpack.c.l.b16 %v869
        %v906 = vunpack.c.l.b16 %v870
        %v907 = vunpack.c.l.b16 %v871
        %v908 = vunpack.c.l.b16 %v872
        %v909 = vunpack.c.l.b16 %v873
        %v910 = vunpack.c.l.b16 %v874
        %v911 = vunpack.c.l.b16 %v875
        %v912 = vunpack.c.l.b16 %v876
        %v913 = vunpack.c.l.b16 %v877
        %v914 = vunpack.c.l.b16 %v878
        %v915 = vunpack.c.l.b16 %v879
        %v916 = vpack.c.b16 %v901, %v900
        %v917 = vpack.c.b16 %v903, %v902
        %v918 = vpack.c.b16 %v905, %v904
        %v919 = vpack.c.b16 %v907, %v906
        %v920 = vpack.c.b16 %v909, %v908
        %v921 = vpack.c.b16 %v911, %v910
        %v922 = vpack.c.b16 %v913, %v912
        %v923 = vpack.c.b16 %v915, %v914
        %932 = vmatprep.subr.bf16.mxu0 0
        %933 = vmatpush1.bf16.msra.mxu0 %v916
        %934 = vmatprep.subr.bf16.mxu0 0
        %935 = vmatpush1.bf16.msra.mxu0 %v917
        %936 = vmatprep.subr.bf16.mxu0 0
        %937 = vmatpush1.bf16.msra.mxu0 %v918
        %938 = vmatprep.subr.bf16.mxu0 0
        %939 = vmatpush1.bf16.msra.mxu0 %v919
        %940 = vmatprep.subr.bf16.mxu0 0
        %941 = vmatpush1.bf16.msra.mxu0 %v920
        %942 = vmatprep.subr.bf16.mxu0 0
        %943 = vmatpush1.bf16.msra.mxu0 %v921
        %944 = vmatprep.subr.bf16.mxu0 0
        %945 = vmatpush1.bf16.msra.mxu0 %v922
        %946 = vmatprep.subr.bf16.mxu0 0
        %947 = vmatpush1.bf16.msra.mxu0 %v923
        %948 = vmatprep.subr.bf16.mxu0 0
        %949 = vmatpush1.bf16.msra.mxu0 0
        %950 = vmatprep.subr.bf16.mxu0 0
        %951 = vmatpush1.bf16.msra.mxu0 0
        %952 = vmatprep.subr.bf16.mxu0 0
        %953 = vmatpush1.bf16.msra.mxu0 0
        %954 = vmatprep.subr.bf16.mxu0 0
        %955 = vmatpush1.bf16.msra.mxu0 0
        %956 = vmatprep.subr.bf16.mxu0 0
        %957 = vmatpush1.bf16.msra.mxu0 0
        %958 = vmatprep.subr.bf16.mxu0 0
        %959 = vmatpush1.bf16.msra.mxu0 0
        %960 = vmatprep.subr.bf16.mxu0 0
        %961 = vmatpush1.bf16.msra.mxu0 0
        %962 = vmatprep.subr.bf16.mxu0 0
        %963 = vmatpush1.bf16.msra.mxu0 0
        %964 = vmatprep.mubr.bf16.mxu0 0
        %965 = vmatmul.mubr.bf16.gmra.mrb[0].mxu0 %v856
        %v966 = vpop.f32.mrb[0].mxu0
        %v967 = vadd.f32 %v883, %v966
        %v968 = vpop.f32.mrb[0].mxu0
        %v969 = vpop.f32.mrb[0].mxu0
        %v970 = vadd.f32 %v883, %v969
        %v971 = vpop.f32.mrb[0].mxu0
        %972 = vmatprep.mubr.bf16.mxu0 0
        %973 = vmatmul.mubr.bf16.gmra.mrb[0].mxu0 %v857
        %v974 = vpop.f32.mrb[0].mxu0
        %v975 = vadd.f32 %v883, %v974
        %v976 = vpop.f32.mrb[0].mxu0
        %v977 = vpop.f32.mrb[0].mxu0
        %v978 = vadd.f32 %v883, %v977
        %v979 = vpop.f32.mrb[0].mxu0
        %980 = vmatprep.mubr.bf16.mxu0 0
        %981 = vmatmul.mubr.bf16.gmra.mrb[0].mxu0 %v858
        %v982 = vpop.f32.mrb[0].mxu0
        %v983 = vadd.f32 %v883, %v982
        %v984 = vpop.f32.mrb[0].mxu0
        %v985 = vpop.f32.mrb[0].mxu0
        %v986 = vadd.f32 %v883, %v985
        %v987 = vpop.f32.mrb[0].mxu0
        %988 = vmatprep.mubr.bf16.mxu0 0
        %989 = vmatmul.mubr.bf16.gmra.mrb[0].mxu0 %v859
        %v990 = vpop.f32.mrb[0].mxu0
        %v991 = vadd.f32 %v883, %v990
        %v992 = vpop.f32.mrb[0].mxu0
        %v993 = vpop.f32.mrb[0].mxu0
        %v994 = vadd.f32 %v883, %v993
        %v995 = vpop.f32.mrb[0].mxu0
        %996 = vmatprep.mubr.bf16.mxu0 0
        %997 = vmatmul.mubr.bf16.gmra.mrb[0].mxu0 %v860
        %v998 = vpop.f32.mrb[0].mxu0
        %v999 = vadd.f32 %v883, %v998
        %v1000 = vpop.f32.mrb[0].mxu0
        %v1001 = vpop.f32.mrb[0].mxu0
        %v1002 = vadd.f32 %v883, %v1001
        %v1003 = vpop.f32.mrb[0].mxu0
        %1004 = vmatprep.mubr.bf16.mxu0 0
        %1005 = vmatmul.mubr.bf16.gmra.mrb[0].mxu0 %v861
        %v1006 = vpop.f32.mrb[0].mxu0
        %v1007 = vadd.f32 %v883, %v1006
        %v1008 = vpop.f32.mrb[0].mxu0
        %v1009 = vpop.f32.mrb[0].mxu0
        %v1010 = vadd.f32 %v883, %v1009
        %v1011 = vpop.f32.mrb[0].mxu0
        %1012 = vmatprep.mubr.bf16.mxu0 0
        %1013 = vmatmul.mubr.bf16.gmra.mrb[0].mxu0 %v862
        %v1014 = vpop.f32.mrb[0].mxu0
        %v1015 = vadd.f32 %v883, %v1014
        %v1016 = vpop.f32.mrb[0].mxu0
        %v1017 = vpop.f32.mrb[0].mxu0
        %v1018 = vadd.f32 %v883, %v1017
        %v1019 = vpop.f32.mrb[0].mxu0
        %1020 = vmatprep.mubr.bf16.mxu0 0
        %1021 = vmatmul.mubr.bf16.gmra.mrb[0].mxu0 %v863
        %v1022 = vpop.f32.mrb[0].mxu0
        %v1023 = vadd.f32 %v883, %v1022
        %v1024 = vpop.f32.mrb[0].mxu0
        %v1025 = vpop.f32.mrb[0].mxu0
        %v1026 = vadd.f32 %v883, %v1025
        %v1027 = vpop.f32.mrb[0].mxu0
        %1028 = vdwg.mxu0
        %v1029 = vadd.f32 %v967, %v216
        %v1030 = vadd.f32 %v970, %v217
        %v1031 = vadd.f32 %v975, %v218
        %v1032 = vadd.f32 %v978, %v219
        %v1033 = vadd.f32 %v983, %v220
        %v1034 = vadd.f32 %v986, %v221
        %v1035 = vadd.f32 %v991, %v222
        %v1036 = vadd.f32 %v994, %v223
        %v1037 = vadd.f32 %v999, %v224
        %v1038 = vadd.f32 %v1002, %v225
        %v1039 = vadd.f32 %v1007, %v226
        %v1040 = vadd.f32 %v1010, %v227
        %v1041 = vadd.f32 %v1015, %v228
        %v1042 = vadd.f32 %v1018, %v229
        %v1043 = vadd.f32 %v1023, %v230
        %v1044 = vadd.f32 %v1026, %v231
        %v1045 = vmul.f32 %v1029, 0.1
        %v1046 = vmul.f32 %v1030, 0.1
        %v1047 = vmul.f32 %v1031, 0.1
        %v1048 = vmul.f32 %v1032, 0.1
        %v1049 = vmul.f32 %v1033, 0.1
        %v1050 = vmul.f32 %v1034, 0.1
        %v1051 = vmul.f32 %v1035, 0.1
        %v1052 = vmul.f32 %v1036, 0.1
        %v1053 = vmul.f32 %v1037, 0.1
        %v1054 = vmul.f32 %v1038, 0.1
        %v1055 = vmul.f32 %v1039, 0.1
        %v1056 = vmul.f32 %v1040, 0.1
        %v1057 = vmul.f32 %v1041, 0.1
        %v1058 = vmul.f32 %v1042, 0.1
        %v1059 = vmul.f32 %v1043, 0.1
        %v1060 = vmul.f32 %v1044, 0.1
        %v1061 = vmax.f32 %v1029, %v1045
        %v1062 = vmax.f32 %v1030, %v1046
        %v1063 = vmax.f32 %v1031, %v1047
        %v1064 = vmax.f32 %v1032, %v1048
        %v1065 = vmax.f32 %v1033, %v1049
        %v1066 = vmax.f32 %v1034, %v1050
        %v1067 = vmax.f32 %v1035, %v1051
        %v1068 = vmax.f32 %v1036, %v1052
        %v1069 = vmax.f32 %v1037, %v1053
        %v1070 = vmax.f32 %v1038, %v1054
        %v1071 = vmax.f32 %v1039, %v1055
        %v1072 = vmax.f32 %v1040, %v1056
        %v1073 = vmax.f32 %v1041, %v1057
        %v1074 = vmax.f32 %v1042, %v1058
        %v1075 = vmax.f32 %v1043, %v1059
        %v1076 = vmax.f32 %v1044, %v1060
        %v1077 = vpack.c.bf16 %v1062, %v1061
        %v1078 = vpack.c.bf16 %v1064, %v1063
        %v1079 = vpack.c.bf16 %v1066, %v1065
        %v1080 = vpack.c.bf16 %v1068, %v1067
        %v1081 = vpack.c.bf16 %v1070, %v1069
        %v1082 = vpack.c.bf16 %v1072, %v1071
        %v1083 = vpack.c.bf16 %v1074, %v1073
        %v1084 = vpack.c.bf16 %v1076, %v1075
        %v1093 = vunpack.c.l.b16 %v1077
        %v1094 = vunpack.c.h.b16 %v1077
        %v1095 = vunpack.c.l.b16 %v1078
        %v1096 = vunpack.c.h.b16 %v1078
        %v1097 = vunpack.c.l.b16 %v1079
        %v1098 = vunpack.c.h.b16 %v1079
        %v1099 = vunpack.c.l.b16 %v1080
        %v1100 = vunpack.c.h.b16 %v1080
        %v1101 = vunpack.c.l.b16 %v1081
        %v1102 = vunpack.c.h.b16 %v1081
        %v1103 = vunpack.c.l.b16 %v1082
        %v1104 = vunpack.c.h.b16 %v1082
        %v1105 = vunpack.c.l.b16 %v1083
        %v1106 = vunpack.c.h.b16 %v1083
        %v1107 = vunpack.c.l.b16 %v1084
        %v1108 = vunpack.c.h.b16 %v1084
        %v1109 = vpack.c.b16 %v1093, %v1093
        %v1110 = vpack.c.b16 %v1094, %v1094
        %v1111 = vpack.c.b16 %v1095, %v1095
        %v1112 = vpack.c.b16 %v1096, %v1096
        %v1113 = vpack.c.b16 %v1097, %v1097
        %v1114 = vpack.c.b16 %v1098, %v1098
        %v1115 = vpack.c.b16 %v1099, %v1099
        %v1116 = vpack.c.b16 %v1100, %v1100
        %v1117 = vpack.c.b16 %v1101, %v1101
        %v1118 = vpack.c.b16 %v1102, %v1102
        %v1119 = vpack.c.b16 %v1103, %v1103
        %v1120 = vpack.c.b16 %v1104, %v1104
        %v1121 = vpack.c.b16 %v1105, %v1105
        %v1122 = vpack.c.b16 %v1106, %v1106
        %v1123 = vpack.c.b16 %v1107, %v1107
        %v1124 = vpack.c.b16 %v1108, %v1108
        %1141 = vst [vmem:[%s191] sm:$0xf] %v1109
        %1142 = vst [vmem:[%s191 + $0x4] sm:$0xf] %v1110
        %1143 = vst [vmem:[%s191 + $0x8] sm:$0xf] %v1111
        %1144 = vst [vmem:[%s191 + $0xc] sm:$0xf] %v1112
        %1145 = vst [vmem:[%s191 + $0x10] sm:$0xf] %v1113
        %1146 = vst [vmem:[%s191 + $0x14] sm:$0xf] %v1114
        %1147 = vst [vmem:[%s191 + $0x18] sm:$0xf] %v1115
        %1148 = vst [vmem:[%s191 + $0x1c] sm:$0xf] %v1116
        %1149 = vst [vmem:[%s191 + $0x20] sm:$0xf] %v1117
        %1150 = vst [vmem:[%s191 + $0x24] sm:$0xf] %v1118
        %1151 = vst [vmem:[%s191 + $0x28] sm:$0xf] %v1119
        %1152 = vst [vmem:[%s191 + $0x2c] sm:$0xf] %v1120
        %1153 = vst [vmem:[%s191 + $0x30] sm:$0xf] %v1121
        %1154 = vst [vmem:[%s191 + $0x34] sm:$0xf] %v1122
        %1155 = vst [vmem:[%s191 + $0x38] sm:$0xf] %v1123
        %1156 = vst [vmem:[%s191 + $0x3c] sm:$0xf] %v1124
        %s1157 = sand.u32 %s115, 1
        %s1158 = scalar_lea.sflag [#allocation3], %s1157
        %s1159 = sand.u32 %s115, 1
        %s1160 = smul.addr %s1159, 64
        %s1161 = scalar_lea.vmem [#allocation2], %s1160
        // Predicated region
        $region37: #{residual_block.1} parent=35 // pred_check
          %p1162 = pneg %p125
        $region38: #{residual_block.1} parent=35 // pred_check_branch
          %1164 = sbr.rel (%p1162) target = $region40
        $region39: #{residual_block.1} parent=35 // pred_region
          %s1165 = smul.u32 16, %s18
          %s1167 = ssub.s32 1024, 1024
          %1168 = vsyncadd %s1158, %s1167
          %s1169 = smul.addr %s1165, 64
          %s1170 = scalar_lea.hbm %s4, %s1169
          %s1171 = sshll.u32 %s1161, 4
          %s1172 = int_to_ptr.vmem [resolvable:$true] %s1171
          %1177 = dma.vmem_to_hbm [thread:$0]  %s1172, 1024, %s1170, %s1158, 64, 64, 4
        $region40: #{residual_block.1} parent=35 // pred_fallthru
          _
      $region36: #{residual_block.1} parent=5 // pred_fallthru
        _
      %p1178 = scmp.le.s32.totalorder 2, %s13
      // Predicated region
      $region41: #{residual_block.1} parent=5 // pred_check
        %p1179 = pneg %p1178
      $region42: #{residual_block.1} parent=5 // pred_check_branch
        %1181 = sbr.rel (%p1179) target = $region44
      $region43: #{residual_block.1} parent=5 // pred_region
        %s1182 = ssub.s32 %s13, 2
        // Predicated region
        $region45: #{residual_block.1} parent=43 // pred_check
          %p1183 = pneg %p131
        $region46: #{residual_block.1} parent=43 // pred_check_branch
          %1185 = sbr.rel (%p1183) target = $region48
        $region47: #{residual_block.1} parent=43 // pred_region
          %s1186 = sand.u32 %s116, 1
          %s1187 = scalar_lea.sflag [#allocation3], %s1186
          %s1188 = sand.u32 %s116, 1
          %s1189 = smul.addr %s1188, 64
          %s1190 = scalar_lea.vmem [#allocation2], %s1189
          %1191 = dma.done %s1187, 1024
        $region48: #{residual_block.1} parent=43 // pred_fallthru
          _
      $region44: #{residual_block.1} parent=5 // pred_fallthru
        _
    $region6: #{residual_block.1} parent=1 // loop_footer
      %s17 = sadd.s32 1, %s13
    $region7: #{residual_block.1} parent=1 // loop_footer_branch
      %12 = sbr.rel target = $region3
    $region8: #{residual_block.1} parent=1 // loop_exit
      _
    %1192 = vsyncpa [#allocation3], 1
    %s1193 = scalar_lea.sflag [#allocation3], 1
    %1194 = vsyncpa %s1193, 1

</llo_original>
